<compile_context>
chip_gen: v7x
topology: tpu7x:2x2x1
jax: 0.10.0
libtpu: 0.0.40
codegen_flags: <defaults>
</compile_context>

<pallas_src>
import math

import jax
import jax.numpy as jnp
from jax.experimental import pallas as pl
from jax.experimental.pallas import tpu as pltpu


def _round_up(x: int, m: int) -> int:
    return (x + m - 1) // m * m


def _make_kernel(pack: int, tbr: int, row_chunk: int):
    """Kernel closure over static packing factor, block rows and strip size."""
    n_chunks = tbr // row_chunk

    def kernel(t_ref, ftab_ref, phase_ref, out_ref):
        # t_ref:     (TBr, pack) f32  -- `pack` timesteps per packed output row
        # ftab_ref:  (pack, W)  f32   -- masked per-lane frequency table
        #                                (freq on lanes owned by slot k, else 0.0)
        # phase_ref: (1, W)     f32   -- pi/2 on cos lanes, 0 on sin / pad lanes
        # out_ref:   (TBr, W)         -- W lane-dense whenever possible
        ftab = ftab_ref[...]
        phase = phase_ref[...]

        def compute(r0):
            t_blk = t_ref[pl.ds(r0, row_chunk), :]            # (row_chunk, pack)
            # Exact FMA chain: off-slot lanes of ftab are 0.0, so each output lane
            # receives exactly one t*f product (no extra rounding from the sum).
            args = t_blk[:, 0:1] * ftab[0:1, :]
            for k in range(1, pack):
                args = args + t_blk[:, k:k + 1] * ftab[k:k + 1, :]
            # Single transcendental: sin(x) on sin/pad lanes, sin(x + pi/2) = cos(x)
            # on cos lanes; pad lanes have freq=0, phase=0 -> sin(0) = 0.
            out_ref[pl.ds(r0, row_chunk), :] = jnp.sin(args + phase).astype(out_ref.dtype)

        if n_chunks == 1:
            compute(0)
        else:
            def body(c, carry):
                compute(pl.multiple_of(c * row_chunk, row_chunk))
                return carry
            jax.lax.fori_loop(0, n_chunks, body, 0)

    return kernel


def _reference(t: jax.Array, dim: int) -> jax.Array:
    """Pure-JAX reference (also the tiny-batch fast path); mirrors the PyTorch code."""
    half_dim = dim // 2
    frequencies = jnp.exp(
        jnp.arange(half_dim, dtype=jnp.float32) * (-math.log(10000.0) / (half_dim - 1))
    )
    t2d = jnp.reshape(t, (-1, 1)).astype(jnp.float32)
    freqs = t2d * frequencies[None, :]
    emb = jnp.concatenate([jnp.sin(freqs), jnp.cos(freqs)], axis=1)
    if dim % 2:
        emb = jnp.concatenate([emb, jnp.zeros_like(emb[:, :1])], axis=1)
    return emb


def sinusoidal_embedding(t: jax.Array, dim: int, *, use_pallas=None,
                         out_dtype=jnp.float32) -> jax.Array:
    """JAX/Pallas equivalent of SinusoidalEmbedding.forward.

    Args:
      t: timesteps, any shape; flattened like t.view(-1, 1).
      dim: embedding dimension (>= 4; dim < 4 divides by zero, same as PyTorch).
      use_pallas: True/False to force a path, None for size-based auto dispatch.
      out_dtype: output dtype (f32 default matches PyTorch; bf16 halves writeback).

    Returns:
      (B, dim) embeddings, B = t.size.
    """
    assert dim >= 4, "dim < 4 divides by zero in the frequency slope (as in PyTorch)"
    half_dim = dim // 2
    slope = -math.log(10000.0) / (half_dim - 1)
    frequencies = jnp.exp(jnp.arange(half_dim, dtype=jnp.float32) * slope)

    t_flat = jnp.reshape(t, (-1,)).astype(jnp.float32)
    batch = t_flat.shape[0]

    if use_pallas is None:
        # Standalone pallas_call has multi-us dispatch + prologue cost; below ~1 MiB of
        # output, let XLA fuse the pure-JAX expression into the consumer instead.
        use_pallas = batch * dim * 4 >= (1 << 20)
    if not use_pallas:
        return _reference(t_flat, dim).astype(out_dtype)

    # ---- choose lane layout ------------------------------------------------------
    if dim < 128 and 128 % dim == 0:
        pack = 128 // dim          # several timesteps per 128-lane output row
        w_store = 128
    elif dim % 128 == 0:
        pack = 1
        w_store = dim              # already lane-dense
    else:
        pack = 1
        w_pad = _round_up(dim, 128)
        # Pad up to lane-dense width only when the wasted HBM fraction is modest.
        w_store = w_pad if 2 * (w_pad - dim) <= w_pad else dim

    # ---- grid-invariant per-lane tables (same jnp.exp values as the reference) ----
    lane = jnp.arange(w_store, dtype=jnp.int32)
    slot = lane // dim                              # packed-timestep slot per lane
    p = lane % dim                                  # position within one embedding
    in_emb = lane < pack * dim                      # excludes right-pad lanes
    is_sin = (p < half_dim) & in_emb
    is_cos = (p >= half_dim) & (p < 2 * half_dim) & in_emb
    fidx = jnp.where(is_cos, p - half_dim, jnp.where(is_sin, p, 0))
    freq_lane = jnp.where(is_sin | is_cos, frequencies[fidx], 0.0)       # (W,)
    phase_row = jnp.where(is_cos, jnp.float32(math.pi / 2.0), 0.0).reshape(1, w_store)
    kidx = jnp.arange(pack, dtype=jnp.int32).reshape(pack, 1)
    ftab = jnp.where(slot.reshape(1, w_store) == kidx,
                     freq_lane.reshape(1, w_store), 0.0)                 # (pack, W)

    # ---- tile sizing: ~2 MiB output tiles, >= 2 grid steps when possible ----------
    ROW_CHUNK = 256                                  # in-kernel strip (vreg pressure)
    TILE_BYTES = 2 * 1024 * 1024
    rows = -(-batch // pack)
    rows8 = _round_up(rows, 8)

    target_tbr = max(8, min(4096, (TILE_BYTES // (w_store * 4)) // 8 * 8))
    if rows8 > 8:
        # Keep at least two grid steps so the "parallel" axis shards across both
        # TensorCores on v7x (single-TC v5e/v6e are unaffected).
        two_step = _round_up(-(-rows8 // 2), 8)
        tbr = min(target_tbr, two_step)
    else:
        tbr = rows8
    tbr = max(tbr, 8)
    if tbr >= ROW_CHUNK:
        tbr = tbr // ROW_CHUNK * ROW_CHUNK
        row_chunk = ROW_CHUNK
    else:
        row_chunk = tbr
    rows_padded = _round_up(rows, tbr)
    batch_padded = rows_padded * pack

    if batch_padded != batch:
        t_flat = jnp.pad(t_flat, (0, batch_padded - batch))
    t_packed = t_flat.reshape(rows_padded, pack)

    grid_steps = rows_padded // tbr
    cost = pl.CostEstimate(
        flops=rows_padded * w_store * (2 * pack + 1),
        transcendentals=rows_padded * w_store,
        bytes_accessed=4 * (rows_padded * pack + pack * w_store + w_store)
        + rows_padded * w_store * jnp.dtype(out_dtype).itemsize,
    )

    kernel = _make_kernel(pack, tbr, row_chunk)
    out_packed = pl.pallas_call(
        kernel,
        out_shape=jax.ShapeDtypeStruct((rows_padded, w_store), out_dtype),
        grid=(grid_steps,),
        in_specs=[
            pl.BlockSpec((tbr, pack), lambda i: (i, 0)),
            pl.BlockSpec((pack, w_store), lambda i: (0, 0)),  # grid-invariant tables
            pl.BlockSpec((1, w_store), lambda i: (0, 0)),
        ],
        out_specs=pl.BlockSpec((tbr, w_store), lambda i: (i, 0)),
        compiler_params=pltpu.CompilerParams(dimension_semantics=("parallel",)),
        cost_estimate=cost,
    )(t_packed, ftab, phase_row)

    # Pure layout plumbing back to (B, dim); row-major reshape / slicing is cheap.
    if pack > 1:
        out = out_packed.reshape(rows_padded * pack, dim)   # w_store == pack * dim
    else:
        out = out_packed[:, :dim] if w_store != dim else out_packed
    if out.shape[0] != batch:
        out = out[:batch]
    return out


if __name__ == "__main__":
    key = jax.random.PRNGKey(0)
    k1, k2, k3 = jax.random.split(key, 3)

    # Tolerance note: cos(x) is computed as sin(x + pi/2); for |t*f| up to ~1e3 the f32
    # rounding of the phase add perturbs the argument by up to ~6e-5, so compare with a
    # correspondingly loose absolute tolerance (real layout/packing bugs are O(1)).
    ATOL = 2e-4

    # Case 1: small batch, dim=64 -> packed lane-dense path (pack=2, W=128), 2 grid steps.
    b1, d1 = 64, 64
    t1 = jax.random.uniform(k1, (b1,), jnp.float32, minval=0.0, maxval=1000.0)
    o1 = jax.block_until_ready(sinusoidal_embedding(t1, d1, use_pallas=True))
    r1 = _reference(t1, d1)
    assert o1.shape == (b1, d1), o1.shape
    assert jnp.allclose(o1, r1, atol=ATOL, rtol=0.0), "mismatch (dim=64 packed path)"

    # Case 2: odd dim (zero-pad column), non-divisor of 128 -> general (unpadded) path.
    b2, d2 = 40, 33
    t2 = jax.random.uniform(k2, (b2,), jnp.float32, minval=0.0, maxval=1000.0)
    o2 = jax.block_until_ready(sinusoidal_embedding(t2, d2, use_pallas=True))
    r2 = _reference(t2, d2)
    assert o2.shape == (b2, d2), o2.shape
    assert jnp.allclose(o2, r2, atol=ATOL, rtol=0.0), "mismatch (odd-dim path)"

    # Case 3: larger batch -> multi-step grid with in-kernel 256-row strip-mining.
    b3, d3 = 4096, 64
    t3 = jax.random.uniform(k3, (b3,), jnp.float32, minval=0.0, maxval=1000.0)
    o3 = jax.block_until_ready(sinusoidal_embedding(t3, d3, use_pallas=True))
    r3 = _reference(t3, d3)
    assert o3.shape == (b3, d3), o3.shape
    assert jnp.allclose(o3, r3, atol=ATOL, rtol=0.0), "mismatch (gridded path)"

    # Case 4: tiny batch with auto dispatch -> pure-JAX fast path (below ~1 MiB output).
    o4 = jax.block_until_ready(sinusoidal_embedding(t1[:8], d1))
    assert o4.shape == (8, d1)
    assert jnp.allclose(o4, _reference(t1[:8], d1), atol=1e-6), "mismatch (jax path)"

    print("KERNEL_OK")
</pallas_src>

<mosaic_0001>
module attributes {stable_mosaic.version = 11 : i64} {
  func.func @kernel(%arg0: i32, %arg1: memref<16x2xf32, #tpu.memory_space<vmem>>, %arg2: memref<2x128xf32, #tpu.memory_space<vmem>>, %arg3: memref<1x128xf32, #tpu.memory_space<vmem>>, %arg4: memref<16x128xf32, #tpu.memory_space<vmem>>) attributes {dimension_semantics = [#tpu.dimension_semantics<parallel>], iteration_bounds = array<i64: 2>, scalar_prefetch = 0 : i64, scratch_operands = 0 : i64, tpu.core_type = #tpu.core_type<tc>, window_params = [{transform_indices = @transform_0, window_bounds = array<i64: 16, 2>}, {pipeline_mode = #tpu.pipeline_mode<synchronous>, transform_indices = @transform_1, window_bounds = array<i64: 2, 128>}, {pipeline_mode = #tpu.pipeline_mode<synchronous>, transform_indices = @transform_2, window_bounds = array<i64: 1, 128>}, {transform_indices = @transform_3, window_bounds = array<i64: 16, 128>}]} {
    %c0 = arith.constant 0 : index
    %c0_0 = arith.constant 0 : index
    %0 = vector.load %arg2[%c0, %c0_0] : memref<2x128xf32, #tpu.memory_space<vmem>>, vector<2x128xf32>
    %c0_1 = arith.constant 0 : index
    %c0_2 = arith.constant 0 : index
    %1 = vector.load %arg3[%c0_1, %c0_2] : memref<1x128xf32, #tpu.memory_space<vmem>>, vector<1x128xf32>
    %c0_3 = arith.constant 0 : index
    %c0_4 = arith.constant 0 : index
    %2 = vector.load %arg1[%c0_3, %c0_4] : memref<16x2xf32, #tpu.memory_space<vmem>>, vector<16x2xf32>
    %3 = vector.extract_strided_slice %2 {offsets = [0, 0], sizes = [16, 1], strides = [1, 1]} : vector<16x2xf32> to vector<16x1xf32>
    %4 = vector.extract_strided_slice %0 {offsets = [0, 0], sizes = [1, 128], strides = [1, 1]} : vector<2x128xf32> to vector<1x128xf32>
    %5 = vector.broadcast %3 : vector<16x1xf32> to vector<16x128xf32>
    %6 = vector.broadcast %4 : vector<1x128xf32> to vector<16x128xf32>
    %7 = arith.mulf %5, %6 : vector<16x128xf32>
    %8 = vector.extract_strided_slice %2 {offsets = [0, 1], sizes = [16, 1], strides = [1, 1]} : vector<16x2xf32> to vector<16x1xf32>
    %9 = vector.extract_strided_slice %0 {offsets = [1, 0], sizes = [1, 128], strides = [1, 1]} : vector<2x128xf32> to vector<1x128xf32>
    %10 = vector.broadcast %8 : vector<16x1xf32> to vector<16x128xf32>
    %11 = vector.broadcast %9 : vector<1x128xf32> to vector<16x128xf32>
    %12 = arith.mulf %10, %11 : vector<16x128xf32>
    %13 = arith.addf %7, %12 : vector<16x128xf32>
    %14 = vector.broadcast %1 : vector<1x128xf32> to vector<16x128xf32>
    %15 = arith.addf %13, %14 : vector<16x128xf32>
    %16 = math.sin %15 : vector<16x128xf32>
    %c0_5 = arith.constant 0 : index
    %c0_6 = arith.constant 0 : index
    %17 = vector.load %arg4[%c0_5, %c0_6] : memref<16x128xf32, #tpu.memory_space<vmem>>, vector<16x128xf32>
    tpu.vector_store %arg4[%c0_5, %c0_6], %16 {strides = array<i32>} : memref<16x128xf32, #tpu.memory_space<vmem>>, vector<16x128xf32>,
    return
  }
  func.func @transform_0(%arg0: i32) -> (i32, i32) {
    %c0_i32 = arith.constant 0 : i32
    %c0_i32_0 = arith.constant 0 : i32
    return %arg0, %c0_i32 : i32, i32
  }
  func.func @transform_1(%arg0: i32) -> (i32, i32) {
    %c0_i32 = arith.constant 0 : i32
    %c0_i32_0 = arith.constant 0 : i32
    %c0_i32_1 = arith.constant 0 : i32
    return %c0_i32, %c0_i32_0 : i32, i32
  }
  func.func @transform_2(%arg0: i32) -> (i32, i32) {
    %c0_i32 = arith.constant 0 : i32
    %c0_i32_0 = arith.constant 0 : i32
    %c0_i32_1 = arith.constant 0 : i32
    return %c0_i32, %c0_i32_0 : i32, i32
  }
  func.func @transform_3(%arg0: i32) -> (i32, i32) {
    %c0_i32 = arith.constant 0 : i32
    %c0_i32_0 = arith.constant 0 : i32
    return %arg0, %c0_i32 : i32, i32
  }
}

</mosaic_0001>

<llo_original>
// kernel: tpu_custom_call.1
$region0: #{tpu_custom_call.1}
  #allocation0 [shape = 'u32[]', space=smem, size = 0x4, offset = 0x4, fixed_abs, tag = 'smem constant byte address 0x4 - core index']
  #allocation1 [shape = 'u32[144,128]{1,0:T(1,128)}', space=vmem, size = 0x12000, scoped, tag = 'internal scratch']
  %s0 = inlined_call_operand.vmem [shape: f32[32,2], index: 0, kind: input, shape index: {}]
  %s1 = inlined_call_operand.vmem [shape: f32[2,128], index: 1, kind: input, shape index: {}]
  %s2 = inlined_call_operand.vmem [shape: f32[1,128], index: 2, kind: input, shape index: {}]
  %s3 = inlined_call_operand.hbm [shape: f32[32,128], index: 3, kind: output, shape index: {}]
  %s4 = sld [smem:[#allocation0]]
  $region45: #{tpu_custom_call.1} parent=0
    _
  %s6 = ssub.s32 1, %s4
  %s7 = scalar_select 0, %s6, %s4
  $region1: #{tpu_custom_call.1} parent=0
    #allocation2 [shape = 'u8[16384]{0}', space=vmem, size = 0x4000, scoped, tag = 'output window, operand 0']
    #allocation3 [shape = 's32[2]{0}', space=sflag, size = 0x8, scoped, tag = 'scoped memory for tpu_custom_call.1']
    %8 = vsyncpa [#allocation3], 0
    %s9 = scalar_lea.sflag [#allocation3], 1
    %10 = vsyncpa %s9, 0
    loop: start=0, step=1, limit=4
    $region2: #{tpu_custom_call.1} parent=1 // loop_pre_header
      _
    $region3: #{tpu_custom_call.1} parent=1 // loop_header
      %s12 = sphi 0, %s16
      %p13 = scmp.ge.s32.totalorder %s12, 4
      %s22 = sphi 0, %s24
      %s25 = sphi 0, %s22
      %s26 = sphi 0, %s25
      %s42 = sphi 0, %s26
      %s46 = sphi 0, %s46
      %s48 = sphi 0, %s46
      %s49 = sphi 0, %s48
      %s63 = sphi 0, %s49
      %s67 = sphi 0, %s67
      %s69 = sphi 0, %s67
      %s70 = sphi 0, %s69
      %s84 = sphi 0, %s70
      %s90 = sphi 0, %s92
      %s93 = sphi 0, %s90
      %s94 = sphi 0, %s93
      %s110 = sphi 0, %s94
    $region4: #{tpu_custom_call.1} parent=1 // loop_header_branch
      %15 = sbr.rel (%p13) target = $region8
    $region5: #{tpu_custom_call.1} parent=1 // loop_body
      %s17 = ssub.s32 %s12, 1
      %s18 = ssub.s32 %s12, 2
      %s19 = sadd.s32 %s12, 1
      %s20 = ssub.s32 %s12, %s19
      %p21 = scmp.eq.s32.totalorder %s20, 0
      %s23 = sadd.s32 %s22, 1
      %s24 = scalar_select %p21, %s22, %s23
      %p27 = pneg %p21
      %p28 = scmp.eq.s32.totalorder %s12, 1
      %p29 = por %p27, %p28
      %p30 = scmp.ne.s32.totalorder %s22, %s25
      %p31 = scmp.eq.s32.totalorder %s12, 0
      %p32 = por %p30, %p31
      %p33 = scmp.ne.s32.totalorder %s22, %s25
      %p34 = scmp.eq.s32.totalorder %s17, 1
      %p35 = por %p33, %p34
      %p36 = scmp.ne.s32.totalorder %s25, %s26
      %p37 = scmp.eq.s32.totalorder %s17, 0
      %p38 = por %p36, %p37
      %p39 = scmp.ne.s32.totalorder %s25, %s26
      %p40 = scmp.eq.s32.totalorder %s18, 1
      %p41 = por %p39, %p40
      %p43 = scmp.ne.s32.totalorder %s26, %s42
      %p44 = scmp.eq.s32.totalorder %s18, 0
      %p45 = por %p43, %p44
      %s47 = sadd.s32 %s46, 1
      %p50 = scmp.eq.s32.totalorder %s12, 1
      %p51 = scmp.ne.s32.totalorder %s46, %s48
      %p52 = scmp.eq.s32.totalorder %s12, 0
      %p53 = por %p51, %p52
      %p54 = scmp.ne.s32.totalorder %s46, %s48
      %p55 = scmp.eq.s32.totalorder %s17, 1
      %p56 = por %p54, %p55
      %p57 = scmp.ne.s32.totalorder %s48, %s49
      %p58 = scmp.eq.s32.totalorder %s17, 0
      %p59 = por %p57, %p58
      %p60 = scmp.ne.s32.totalorder %s48, %s49
      %p61 = scmp.eq.s32.totalorder %s18, 1
      %p62 = por %p60, %p61
      %p64 = scmp.ne.s32.totalorder %s49, %s63
      %p65 = scmp.eq.s32.totalorder %s18, 0
      %p66 = por %p64, %p65
      %s68 = sadd.s32 %s67, 1
      %p71 = scmp.eq.s32.totalorder %s12, 1
      %p72 = scmp.ne.s32.totalorder %s67, %s69
      %p73 = scmp.eq.s32.totalorder %s12, 0
      %p74 = por %p72, %p73
      %p75 = scmp.ne.s32.totalorder %s67, %s69
      %p76 = scmp.eq.s32.totalorder %s17, 1
      %p77 = por %p75, %p76
      %p78 = scmp.ne.s32.totalorder %s69, %s70
      %p79 = scmp.eq.s32.totalorder %s17, 0
      %p80 = por %p78, %p79
      %p81 = scmp.ne.s32.totalorder %s69, %s70
      %p82 = scmp.eq.s32.totalorder %s18, 1
      %p83 = por %p81, %p82
      %p85 = scmp.ne.s32.totalorder %s70, %s84
      %p86 = scmp.eq.s32.totalorder %s18, 0
      %p87 = por %p85, %p86
      %s88 = ssub.s32 %s12, %s19
      %p89 = scmp.eq.s32.totalorder %s88, 0
      %s91 = sadd.s32 %s90, 1
      %s92 = scalar_select %p89, %s90, %s91
      %p95 = pneg %p89
      %p96 = scmp.eq.s32.totalorder %s12, 1
      %p97 = por %p95, %p96
      %p98 = scmp.ne.s32.totalorder %s90, %s93
      %p99 = scmp.eq.s32.totalorder %s12, 0
      %p100 = por %p98, %p99
      %p101 = scmp.ne.s32.totalorder %s90, %s93
      %p102 = scmp.eq.s32.totalorder %s17, 1
      %p103 = por %p101, %p102
      %p104 = scmp.ne.s32.totalorder %s93, %s94
      %p105 = scmp.eq.s32.totalorder %s17, 0
      %p106 = por %p104, %p105
      %p107 = scmp.ne.s32.totalorder %s93, %s94
      %p108 = scmp.eq.s32.totalorder %s18, 1
      %p109 = por %p107, %p108
      %p111 = scmp.ne.s32.totalorder %s94, %s110
      %p112 = scmp.eq.s32.totalorder %s18, 0
      %p113 = por %p111, %p112
      %p114 = scmp.le.s32.totalorder 1, %s12
      %p115 = scmp.lt.s32.totalorder %s12, 3
      %p116 = pnand %p114, %p115
      %p117 = pneg %p116
      // Predicated region
      $region9: #{tpu_custom_call.1} parent=5 // pred_check
        _
      $region10: #{tpu_custom_call.1} parent=5 // pred_check_branch
        %119 = sbr.rel (%p116) target = $region12
      $region11: #{tpu_custom_call.1} parent=5 // pred_region
        %s120 = ssub.s32 %s12, 1
        // Predicated region
        $region13: #{tpu_custom_call.1} parent=11 // pred_check
          %p121 = pneg %p59
        $region14: #{tpu_custom_call.1} parent=11 // pred_check_branch
          %123 = sbr.rel (%p121) target = $region16
        $region15: #{tpu_custom_call.1} parent=11 // pred_region
          _
        $region16: #{tpu_custom_call.1} parent=11 // pred_fallthru
          _
        // Predicated region
        $region17: #{tpu_custom_call.1} parent=11 // pred_check
          %p124 = pneg %p80
        $region18: #{tpu_custom_call.1} parent=11 // pred_check_branch
          %126 = sbr.rel (%p124) target = $region20
        $region19: #{tpu_custom_call.1} parent=11 // pred_region
          _
        $region20: #{tpu_custom_call.1} parent=11 // pred_fallthru
          _
      $region12: #{tpu_custom_call.1} parent=5 // pred_fallthru
        _
      %p127 = scmp.lt.s32.totalorder %s12, 2
      // Predicated region
      $region21: #{tpu_custom_call.1} parent=5 // pred_check
        %p128 = pneg %p127
      $region22: #{tpu_custom_call.1} parent=5 // pred_check_branch
        %130 = sbr.rel (%p128) target = $region24
      $region23: #{tpu_custom_call.1} parent=5 // pred_region
        // Predicated region
        $region25: #{tpu_custom_call.1} parent=23 // pred_check
          %p131 = pneg %p32
        $region26: #{tpu_custom_call.1} parent=23 // pred_check_branch
          %133 = sbr.rel (%p131) target = $region28
        $region27: #{tpu_custom_call.1} parent=23 // pred_region
          %s134 = smul.u32 2, %s12
          %p135 = scmp.lt.s32.totalorder %s134, 3
          %s136 = scalar_select %p135, %s134, 3
          %s137 = smul.addr %s136, 8
          %s138 = scalar_lea.vmem %s0, %s137
          %s139 = smul.u32 2, %s12
        $region28: #{tpu_custom_call.1} parent=23 // pred_fallthru
          _
      $region24: #{tpu_custom_call.1} parent=5 // pred_fallthru
        _
      %p140 = scmp.le.s32.totalorder 1, %s12
      %p141 = scmp.lt.s32.totalorder %s12, 3
      %p142 = pnand %p140, %p141
      %p143 = pneg %p142
      // Predicated region
      $region29: #{tpu_custom_call.1} parent=5 // pred_check
        _
      $region30: #{tpu_custom_call.1} parent=5 // pred_check_branch
        %145 = sbr.rel (%p142) target = $region32
      $region31: #{tpu_custom_call.1} parent=5 // pred_region
        %s146 = ssub.s32 %s12, 1
        %s147 = smul.u32 2, %s17
        %p148 = scmp.lt.s32.totalorder %s147, 3
        %s149 = scalar_select %p148, %s147, 3
        %s150 = smul.addr %s149, 8
        %s151 = scalar_lea.vmem %s0, %s150
        %p152 = pneg %p38
        %p153 = pneg %p35
        %p154 = pneg %p59
        %p155 = pneg %p56
        %p156 = pneg %p80
        %p157 = pneg %p77
        %p158 = pneg %p106
        %p159 = pneg %p103
        %s160 = sand.u32 %s93, 1
        %s161 = scalar_lea.sflag [#allocation3], %s160
        %s162 = sand.u32 %s93, 1
        %s163 = smul.addr %s162, 16
        %s164 = scalar_lea.vmem [#allocation2], %s163
        %s165 = smul.u32 2, %s17
        %p166 = scmp.lt.s32.totalorder %s165, 3
        %s167 = scalar_select %p166, %s165, 3
        %s168 = smul.addr %s167, 8
        %s169 = scalar_lea.vmem %s0, %s168
        %s170 = smul.u32 2, %s17
        %s171 = smul.u32 2, %s17
        %v172 = vld [vmem:[%s1] sm:$0x3]
        %v173 = vld [vmem:[%s2] sm:$0x1]
        %v174 = vld [vmem:[%s169] sm:$0xff]
        %v175 = vld [vmem:[%s169 + $0x8] sm:$0xff]
        %177 = vset.pattern.permute.xlu0 0
        %178 = vperm.xlu0 %177, %v174
        %v179 = vpop.permute.xlu0 %178
        %182 = vset.pattern.permute.xlu0 0
        %183 = vperm.xlu0 %182, %v175
        %v184 = vpop.permute.xlu0 %183
        %v186 = vlaneseq
        %v187 = vshrl.u32 %v186, 7
        %v188 = vsub.s32 0, %v187
        %v189 = vrot.slane %v172, %v188
        %v190 = vmul.f32 %v179, %v189
        %v191 = vmul.f32 %v184, %v189
        %192 = vset.pattern.permute.xlu0 1
        %193 = vperm.xlu0 %192, %v174
        %v194 = vpop.permute.xlu0 %193
        %196 = vset.pattern.permute.xlu0 1
        %197 = vperm.xlu0 %196, %v175
        %v198 = vpop.permute.xlu0 %197
        %v200 = vlaneseq
        %v201 = vshrl.u32 %v200, 7
        %v202 = vsub.s32 1, %v201
        %v203 = vrot.slane %v172, %v202
        %v204 = vmul.f32 %v194, %v203
        %v205 = vmul.f32 %v198, %v203
        %v206 = vadd.f32 %v190, %v204
        %v207 = vadd.f32 %v191, %v205
        %v209 = vlaneseq
        %v210 = vshrl.u32 %v209, 7
        %v211 = vsub.s32 0, %v210
        %v212 = vrot.slane %v173, %v211
        %v214 = vadd.f32 %v206, %v212
        %v215 = vadd.f32 %v207, %v212
        %v216 = vand.u32 2147483647, %v214
        %vm217 = vcmp.le.f32.partialorder %v216, 0.7853982
        %vm218 = vcmp.lt.s32.totalorder %v214, 0
        %v219 = vand.u32 %v214, 2139095040
        %v220 = vshrl.u32 %v219, 23
        %v221 = vsub.s32 %v220, 127
        %v222 = vand.u32 2147483647, %v214
        %v223 = vand.u32 %v222, 8388607
        %v224 = vor.u32 %v223, 8388608
        %v225 = vsub.s32 0, %v224
        %v226 = vadd.s32 %v221, 1
        %vm227 = vcmp.gt.s32.totalorder %v226, 0
        %v228 = vsel %vm227, %v226, 0
        %v229 = vshrl.u32 %v228, 5
        %v230 = vand.u32 %v228, 31
        %v231 = vsub.s32 32, %v230
        %v232 = vshrl.u32 683565275, %v231
        %v233 = vshll.u32 683565275, %v230
        %v234 = vshrl.u32 2475754826, %v231
        %v235 = vor.u32 %v233, %v234
        %v236 = vshll.u32 2475754826, %v230
        %v237 = vshrl.u32 2131351028, %v231
        %v238 = vor.u32 %v236, %v237
        %v239 = vshll.u32 2131351028, %v230
        %v240 = vshrl.u32 2102212464, %v231
        %v241 = vor.u32 %v239, %v240
        %v242 = vshll.u32 2102212464, %v230
        %v243 = vshrl.u32 920167782, %v231
        %v244 = vor.u32 %v242, %v243
        %v245 = vshll.u32 920167782, %v230
        %v246 = vshrl.u32 1326507024, %v231
        %v247 = vor.u32 %v245, %v246
        %vm248 = vcmp.lt.s32.totalorder %v229, 1
        %vm249 = vcmp.lt.s32.totalorder %v229, 2
        %vm250 = vcmp.lt.s32.totalorder %v229, 3
        %vm251 = vcmp.lt.s32.totalorder %v229, 4
        %v252 = vsel %vm248, %v232, %v235
        %v253 = vsel %vm251, %v241, 2102212464
        %v254 = vsel %vm250, %v238, %v253
        %v255 = vsel %vm249, %v252, %v254
        %v256 = vsel %vm248, %v235, %v238
        %v257 = vsel %vm251, %v244, 920167782
        %v258 = vsel %vm250, %v241, %v257
        %v259 = vsel %vm249, %v256, %v258
        %v260 = vsel %vm248, %v238, %v241
        %v261 = vsel %vm251, %v247, 1326507024
        %v262 = vsel %vm250, %v244, %v261
        %v263 = vsel %vm249, %v260, %v262
        %v264 = vshll.u32 %v224, 8
        %v265 = vmul.u32.u64.compose %v264, %v263
        %v266 = vextract.low.u32 %v265
        %v267 = vextract.high.u32 %v265
        %v268 = vmul.u32.u64.compose %v264, %v259
        %v269 = vextract.low.u32 %v268
        %v270 = vextract.high.u32 %v268
        %v271 = vmul.u32 %v264, %v255
        %v272 = vadd.s32 %v267, %v269
        %vm273 = vc.u32 %v267, %v269
        %v274 = vadd.s32 %v270, 1
        %v275 = vsel %vm273, %v274, %v270
        %v276 = vadd.s32 %v271, %v275
        %v277 = vadd.s32 %v276, 536870912
        %v278 = vshrl.u32 %v277, 30
        %v279 = vshll.u32 %v278, 30
        %v280 = vsub.s32 %v276, %v279
        %vm281 = vcmp.lt.s32.totalorder %v280, 0
        %v282 = vsub.s32 0, %v280
        %v283 = vsel %vm281, %v282, %v280
        %v284 = vclz %v283
        %v285 = vsub.s32 %v284, 2
        %vm286 = vcmp.gt.s32.totalorder 0, %v285
        %v287 = vsel %vm286, 0, %v285
        %v288 = vsub.s32 32, %v287
        %v289 = vshll.u32 %v280, %v287
        %v290 = vshrl.u32 %v272, %v288
        %v291 = vor.u32 %v289, %v290
        %v292 = vsub.s32 4294967266, %v287
        %v293 = vadd.s32 %v292, 127
        %v294 = vshll.u32 %v293, 23
        %v295 = vor.u32 4788187, %v294
        %v296 = vand.u32 2147483647, %v295
        %v298 = vcvt.s32.f32 %v291
        %v299 = vmul.f32 %v298, %v296
        %v300 = vxor.u32 %v299, 2147483648
        %v301 = vsel %vm218, %v300, %v299
        %v302 = vsub.s32 4, %v278
        %v303 = vsel %vm218, %v302, %v278
        %v304 = vsel %vm217, %v214, %v301
        %v305 = vsel %vm217, 0, %v303
        %v306 = vcosq.f32.pop %v304
        %v307 = vsinq.f32.pop %v304
        %vm308 = vweird.f32 %v214
        %v309 = vadd.s32 %v305, 3
        %v310 = vand.u32 %v309, 3
        %vm311 = vcmp.lt.s32.totalorder %v310, 2
        %vm312 = vcmp.eq.s32.totalorder %v310, 0
        %v313 = vxor.u32 %v307, 2147483648
        %v314 = vsel %vm312, %v306, %v313
        %vm315 = vcmp.eq.s32.totalorder %v310, 2
        %v316 = vxor.u32 %v306, 2147483648
        %v317 = vsel %vm315, %v316, %v307
        %v318 = vsel %vm311, %v314, %v317
        %v319 = vsel %vm308, nan, %v318
        %v320 = vand.u32 2147483647, %v215
        %vm321 = vcmp.le.f32.partialorder %v320, 0.7853982
        %vm322 = vcmp.lt.s32.totalorder %v215, 0
        %v323 = vand.u32 %v215, 2139095040
        %v324 = vshrl.u32 %v323, 23
        %v325 = vsub.s32 %v324, 127
        %v326 = vand.u32 2147483647, %v215
        %v327 = vand.u32 %v326, 8388607
        %v328 = vor.u32 %v327, 8388608
        %v329 = vsub.s32 0, %v328
        %v330 = vadd.s32 %v325, 1
        %vm331 = vcmp.gt.s32.totalorder %v330, 0
        %v332 = vsel %vm331, %v330, 0
        %v333 = vshrl.u32 %v332, 5
        %v334 = vand.u32 %v332, 31
        %v335 = vsub.s32 32, %v334
        %v336 = vshrl.u32 683565275, %v335
        %v337 = vshll.u32 683565275, %v334
        %v338 = vshrl.u32 2475754826, %v335
        %v339 = vor.u32 %v337, %v338
        %v340 = vshll.u32 2475754826, %v334
        %v341 = vshrl.u32 2131351028, %v335
        %v342 = vor.u32 %v340, %v341
        %v343 = vshll.u32 2131351028, %v334
        %v344 = vshrl.u32 2102212464, %v335
        %v345 = vor.u32 %v343, %v344
        %v346 = vshll.u32 2102212464, %v334
        %v347 = vshrl.u32 920167782, %v335
        %v348 = vor.u32 %v346, %v347
        %v349 = vshll.u32 920167782, %v334
        %v350 = vshrl.u32 1326507024, %v335
        %v351 = vor.u32 %v349, %v350
        %vm352 = vcmp.lt.s32.totalorder %v333, 1
        %vm353 = vcmp.lt.s32.totalorder %v333, 2
        %vm354 = vcmp.lt.s32.totalorder %v333, 3
        %vm355 = vcmp.lt.s32.totalorder %v333, 4
        %v356 = vsel %vm352, %v336, %v339
        %v357 = vsel %vm355, %v345, 2102212464
        %v358 = vsel %vm354, %v342, %v357
        %v359 = vsel %vm353, %v356, %v358
        %v360 = vsel %vm352, %v339, %v342
        %v361 = vsel %vm355, %v348, 920167782
        %v362 = vsel %vm354, %v345, %v361
        %v363 = vsel %vm353, %v360, %v362
        %v364 = vsel %vm352, %v342, %v345
        %v365 = vsel %vm355, %v351, 1326507024
        %v366 = vsel %vm354, %v348, %v365
        %v367 = vsel %vm353, %v364, %v366
        %v368 = vshll.u32 %v328, 8
        %v369 = vmul.u32.u64.compose %v368, %v367
        %v370 = vextract.low.u32 %v369
        %v371 = vextract.high.u32 %v369
        %v372 = vmul.u32.u64.compose %v368, %v363
        %v373 = vextract.low.u32 %v372
        %v374 = vextract.high.u32 %v372
        %v375 = vmul.u32 %v368, %v359
        %v376 = vadd.s32 %v371, %v373
        %vm377 = vc.u32 %v371, %v373
        %v378 = vadd.s32 %v374, 1
        %v379 = vsel %vm377, %v378, %v374
        %v380 = vadd.s32 %v375, %v379
        %v381 = vadd.s32 %v380, 536870912
        %v382 = vshrl.u32 %v381, 30
        %v383 = vshll.u32 %v382, 30
        %v384 = vsub.s32 %v380, %v383
        %vm385 = vcmp.lt.s32.totalorder %v384, 0
        %v386 = vsub.s32 0, %v384
        %v387 = vsel %vm385, %v386, %v384
        %v388 = vclz %v387
        %v389 = vsub.s32 %v388, 2
        %vm390 = vcmp.gt.s32.totalorder 0, %v389
        %v391 = vsel %vm390, 0, %v389
        %v392 = vsub.s32 32, %v391
        %v393 = vshll.u32 %v384, %v391
        %v394 = vshrl.u32 %v376, %v392
        %v395 = vor.u32 %v393, %v394
        %v396 = vsub.s32 4294967266, %v391
        %v397 = vadd.s32 %v396, 127
        %v398 = vshll.u32 %v397, 23
        %v399 = vor.u32 4788187, %v398
        %v400 = vand.u32 2147483647, %v399
        %v402 = vcvt.s32.f32 %v395
        %v403 = vmul.f32 %v402, %v400
        %v404 = vxor.u32 %v403, 2147483648
        %v405 = vsel %vm322, %v404, %v403
        %v406 = vsub.s32 4, %v382
        %v407 = vsel %vm322, %v406, %v382
        %v408 = vsel %vm321, %v215, %v405
        %v409 = vsel %vm321, 0, %v407
        %v410 = vcosq.f32.pop %v408
        %v411 = vsinq.f32.pop %v408
        %vm412 = vweird.f32 %v215
        %v413 = vadd.s32 %v409, 3
        %v414 = vand.u32 %v413, 3
        %vm415 = vcmp.lt.s32.totalorder %v414, 2
        %vm416 = vcmp.eq.s32.totalorder %v414, 0
        %v417 = vxor.u32 %v411, 2147483648
        %v418 = vsel %vm416, %v410, %v417
        %vm419 = vcmp.eq.s32.totalorder %v414, 2
        %v420 = vxor.u32 %v410, 2147483648
        %v421 = vsel %vm419, %v420, %v411
        %v422 = vsel %vm415, %v418, %v421
        %v423 = vsel %vm412, nan, %v422
        %424 = vst [vmem:[%s164] sm:$0xff] %v319
        %425 = vst [vmem:[%s164 + $0x8] sm:$0xff] %v423
        %s426 = sand.u32 %s93, 1
        %s427 = scalar_lea.sflag [#allocation3], %s426
        %s428 = sand.u32 %s93, 1
        %s429 = smul.addr %s428, 16
        %s430 = scalar_lea.vmem [#allocation2], %s429
        // Predicated region
        $region33: #{tpu_custom_call.1} parent=31 // pred_check
          %p431 = pneg %p103
        $region34: #{tpu_custom_call.1} parent=31 // pred_check_branch
          %433 = sbr.rel (%p431) target = $region36
        $region35: #{tpu_custom_call.1} parent=31 // pred_region
          %s434 = smul.u32 2, %s17
          %s436 = ssub.s32 256, 256
          %437 = vsyncadd %s427, %s436
          %s438 = smul.addr %s434, 128
          %s439 = scalar_lea.hbm %s3, %s438
          %s440 = sshll.u32 %s430, 4
          %s441 = int_to_ptr.vmem [resolvable:$true] %s440
          %446 = dma.vmem_to_hbm [thread:$0]  %s441, 256, %s439, %s427, 128, 128, 8
        $region36: #{tpu_custom_call.1} parent=31 // pred_fallthru
          _
      $region32: #{tpu_custom_call.1} parent=5 // pred_fallthru
        _
      %p447 = scmp.le.s32.totalorder 2, %s12
      // Predicated region
      $region37: #{tpu_custom_call.1} parent=5 // pred_check
        %p448 = pneg %p447
      $region38: #{tpu_custom_call.1} parent=5 // pred_check_branch
        %450 = sbr.rel (%p448) target = $region40
      $region39: #{tpu_custom_call.1} parent=5 // pred_region
        %s451 = ssub.s32 %s12, 2
        // Predicated region
        $region41: #{tpu_custom_call.1} parent=39 // pred_check
          %p452 = pneg %p109
        $region42: #{tpu_custom_call.1} parent=39 // pred_check_branch
          %454 = sbr.rel (%p452) target = $region44
        $region43: #{tpu_custom_call.1} parent=39 // pred_region
          %s455 = sand.u32 %s94, 1
          %s456 = scalar_lea.sflag [#allocation3], %s455
          %s457 = sand.u32 %s94, 1
          %s458 = smul.addr %s457, 16
          %s459 = scalar_lea.vmem [#allocation2], %s458
          %460 = dma.done %s456, 256
        $region44: #{tpu_custom_call.1} parent=39 // pred_fallthru
          _
      $region40: #{tpu_custom_call.1} parent=5 // pred_fallthru
        _
    $region6: #{tpu_custom_call.1} parent=1 // loop_footer
      %s16 = sadd.s32 1, %s12
    $region7: #{tpu_custom_call.1} parent=1 // loop_footer_branch
      %11 = sbr.rel target = $region3
    $region8: #{tpu_custom_call.1} parent=1 // loop_exit
      _
    %461 = vsyncpa [#allocation3], 1
    %s462 = scalar_lea.sflag [#allocation3], 1
    %463 = vsyncpa %s462, 1

</llo_original>
